<compile_context>
chip_gen: v6e
topology: v6e:2x2x1
jax: 0.10.0
libtpu: 0.0.40
codegen_flags: <defaults>
</compile_context>

<pallas_src>
import functools
import math

import jax
import jax.numpy as jnp
from jax.experimental import pallas as pl
from jax.experimental.pallas import tpu as pltpu

# ---------------- small synthetic "bert-base-uncased" config ----------------
VOCAB = 100
MAX_POS = 32
TYPE_VOCAB = 2
HIDDEN = 64           # stands in for 768
NUM_HEADS = 4         # stands in for 12
HEAD_DIM = HIDDEN // NUM_HEADS
INTERMEDIATE = 128    # stands in for 3072
NUM_LAYERS = 2        # stands in for 12
LN_EPS = 1e-12

_VMEM_LIMIT = 32 * 1024 * 1024  # explicit, safe on v5e/v6e/v7x scoped budgets


def _pick_tile_m(m, max_tile=512):
    """Largest row tile that divides m, is a multiple of 8 and <= max_tile."""
    if m <= max_tile:
        return m
    for t in range(max_tile, 0, -8):
        if m % t == 0:
            return t
    return m


def _gelu(x):
    # TODO(synk): HF BERT uses exact erf-GELU; tanh approximation used here.
    c = 0.7978845608028654
    return 0.5 * x * (1.0 + jnp.tanh(c * (x + 0.044715 * x * x * x)))


def _ln(y, gamma, beta, eps):
    mu = jnp.mean(y, axis=-1, keepdims=True)
    yc = y - mu
    var = jnp.mean(yc * yc, axis=-1, keepdims=True)
    return yc * jax.lax.rsqrt(var + eps) * gamma + beta


# ----------------------------- Pallas kernels --------------------------------
def _linear_kernel(x_ref, w_ref, b_ref, o_ref):
    x = x_ref[...].astype(jnp.bfloat16)
    y = jnp.dot(x, w_ref[...], preferred_element_type=jnp.float32) + b_ref[...]
    o_ref[...] = y.astype(o_ref.dtype)


def linear(x, w, b):
    """y = x @ w + b, x:(M,K) f32, w:(K,N) bf16, b:(1,N) f32."""
    m, k = x.shape
    _, n = w.shape
    tm = _pick_tile_m(m)
    return pl.pallas_call(
        _linear_kernel,
        out_shape=jax.ShapeDtypeStruct((m, n), x.dtype),
        grid=(m // tm,),
        in_specs=[
            pl.BlockSpec((tm, k), lambda i: (i, 0)),
            pl.BlockSpec((k, n), lambda i: (0, 0)),
            pl.BlockSpec((1, n), lambda i: (0, 0)),
        ],
        out_specs=pl.BlockSpec((tm, n), lambda i: (i, 0)),
        compiler_params=pltpu.CompilerParams(
            dimension_semantics=("parallel",), vmem_limit_bytes=_VMEM_LIMIT),
    )(x, w, b)


def _layernorm_kernel(x_ref, g_ref, b_ref, o_ref, *, eps):
    x = x_ref[...].astype(jnp.float32)
    o_ref[...] = _ln(x, g_ref[...], b_ref[...], eps).astype(o_ref.dtype)


def layer_norm(x, gamma, beta, eps=LN_EPS):
    m, d = x.shape
    tm = _pick_tile_m(m)
    return pl.pallas_call(
        functools.partial(_layernorm_kernel, eps=eps),
        out_shape=jax.ShapeDtypeStruct((m, d), x.dtype),
        grid=(m // tm,),
        in_specs=[
            pl.BlockSpec((tm, d), lambda i: (i, 0)),
            pl.BlockSpec((1, d), lambda i: (0, 0)),
            pl.BlockSpec((1, d), lambda i: (0, 0)),
        ],
        out_specs=pl.BlockSpec((tm, d), lambda i: (i, 0)),
        compiler_params=pltpu.CompilerParams(
            dimension_semantics=("parallel",), vmem_limit_bytes=_VMEM_LIMIT),
    )(x, gamma, beta)


def _linear_res_ln_kernel(x_ref, w_ref, b_ref, r_ref, g_ref, bt_ref, o_ref, *, eps):
    """out = LayerNorm(x @ w + b + residual)."""
    x = x_ref[...].astype(jnp.bfloat16)
    y = (jnp.dot(x, w_ref[...], preferred_element_type=jnp.float32)
         + b_ref[...] + r_ref[...].astype(jnp.float32))
    o_ref[...] = _ln(y, g_ref[...], bt_ref[...], eps).astype(o_ref.dtype)


def linear_residual_ln(x, w, b, res, gamma, beta, eps=LN_EPS):
    m, k = x.shape
    _, n = w.shape
    tm = _pick_tile_m(m)
    return pl.pallas_call(
        functools.partial(_linear_res_ln_kernel, eps=eps),
        out_shape=jax.ShapeDtypeStruct((m, n), x.dtype),
        grid=(m // tm,),
        in_specs=[
            pl.BlockSpec((tm, k), lambda i: (i, 0)),
            pl.BlockSpec((k, n), lambda i: (0, 0)),
            pl.BlockSpec((1, n), lambda i: (0, 0)),
            pl.BlockSpec((tm, n), lambda i: (i, 0)),
            pl.BlockSpec((1, n), lambda i: (0, 0)),
            pl.BlockSpec((1, n), lambda i: (0, 0)),
        ],
        out_specs=pl.BlockSpec((tm, n), lambda i: (i, 0)),
        compiler_params=pltpu.CompilerParams(
            dimension_semantics=("parallel",), vmem_limit_bytes=_VMEM_LIMIT),
    )(x, w, b, res, gamma, beta)


def _ffn_kernel(x_ref, w1_ref, b1_ref, w2_ref, b2_ref, g_ref, bt_ref, o_ref, *, eps):
    """out = LayerNorm(gelu(x @ w1 + b1) @ w2 + b2 + x). Intermediate stays in VMEM."""
    x = x_ref[...].astype(jnp.float32)
    h = (jnp.dot(x.astype(jnp.bfloat16), w1_ref[...],
                 preferred_element_type=jnp.float32) + b1_ref[...])
    h = _gelu(h)
    y = (jnp.dot(h.astype(jnp.bfloat16), w2_ref[...],
                 preferred_element_type=jnp.float32) + b2_ref[...] + x)
    o_ref[...] = _ln(y, g_ref[...], bt_ref[...], eps).astype(o_ref.dtype)


def ffn_residual_ln(x, w1, b1, w2, b2, gamma, beta, eps=LN_EPS):
    m, d = x.shape
    inter = w1.shape[1]
    tm = _pick_tile_m(m, max_tile=256)  # keep (tm, INTERMEDIATE) scratch modest
    return pl.pallas_call(
        functools.partial(_ffn_kernel, eps=eps),
        out_shape=jax.ShapeDtypeStruct((m, d), x.dtype),
        grid=(m // tm,),
        in_specs=[
            pl.BlockSpec((tm, d), lambda i: (i, 0)),
            pl.BlockSpec((d, inter), lambda i: (0, 0)),
            pl.BlockSpec((1, inter), lambda i: (0, 0)),
            pl.BlockSpec((inter, d), lambda i: (0, 0)),
            pl.BlockSpec((1, d), lambda i: (0, 0)),
            pl.BlockSpec((1, d), lambda i: (0, 0)),
            pl.BlockSpec((1, d), lambda i: (0, 0)),
        ],
        out_specs=pl.BlockSpec((tm, d), lambda i: (i, 0)),
        compiler_params=pltpu.CompilerParams(
            dimension_semantics=("parallel",), vmem_limit_bytes=_VMEM_LIMIT),
    )(x, w1, b1, w2, b2, gamma, beta)


def _attention_kernel(q_ref, kt_ref, v_ref, bias_ref, o_ref, *,
                      scale, num_heads, head_dim):
    # one batch per grid step, all heads at once (amortizes grid overhead)
    q = q_ref[0].astype(jnp.float32) * scale          # (H, S, hd) -- pre-scale q
    kt = kt_ref[0]                                    # (H, hd, S) -- pre-transposed K
    v = v_ref[0]                                      # (H, S, hd)
    s = jnp.einsum("hqd,hds->hqs",
                   q.astype(jnp.bfloat16), kt.astype(jnp.bfloat16),
                   preferred_element_type=jnp.float32)            # (H, S, S)
    s = s + bias_ref[0][None, :, :]                   # additive mask (1, 1, S)
    m = jnp.max(s, axis=-1, keepdims=True)
    p = jnp.exp(s - m)
    p = p * pl.reciprocal(jnp.sum(p, axis=-1, keepdims=True), approx=True)
    ctx = jnp.einsum("hqk,hkd->hqd",
                     p.astype(jnp.bfloat16), v.astype(jnp.bfloat16),
                     preferred_element_type=jnp.float32)          # (H, S, hd)
    # merge heads into one lane-dense (S, H*hd) output slab
    for h in range(num_heads):
        o_ref[0, :, h * head_dim:(h + 1) * head_dim] = ctx[h].astype(o_ref.dtype)


def attention(q, kt, v, bias, scale):
    """q,v: (B,H,S,hd); kt: (B,H,hd,S); bias: (B,1,S) -> (B, S, H*hd)."""
    b, h, s, hd = q.shape
    return pl.pallas_call(
        functools.partial(_attention_kernel, scale=scale,
                          num_heads=h, head_dim=hd),
        out_shape=jax.ShapeDtypeStruct((b, s, h * hd), q.dtype),
        grid=(b,),
        in_specs=[
            pl.BlockSpec((1, h, s, hd), lambda i: (i, 0, 0, 0)),
            pl.BlockSpec((1, h, hd, s), lambda i: (i, 0, 0, 0)),
            pl.BlockSpec((1, h, s, hd), lambda i: (i, 0, 0, 0)),
            pl.BlockSpec((1, 1, s), lambda i: (i, 0, 0)),
        ],
        out_specs=pl.BlockSpec((1, s, h * hd), lambda i: (i, 0, 0)),
        compiler_params=pltpu.CompilerParams(
            dimension_semantics=("parallel",), vmem_limit_bytes=_VMEM_LIMIT),
    )(q, kt, v, bias)


# ------------------------------ model glue -----------------------------------
def init_params(key):
    def nrm(k, shape, dtype=jnp.bfloat16):
        # matmul weights stored bf16 (half HBM traffic, native MXU dtype)
        return (0.02 * jax.random.normal(k, shape, jnp.float32)).astype(dtype)

    keys = iter(jax.random.split(key, 64))
    ones = lambda n=HIDDEN: jnp.ones((1, n), jnp.float32)
    zeros = lambda n=HIDDEN: jnp.zeros((1, n), jnp.float32)

    params = {
        "word_emb": nrm(next(keys), (VOCAB, HIDDEN), jnp.float32),
        "pos_emb": nrm(next(keys), (MAX_POS, HIDDEN), jnp.float32),
        "type_emb": nrm(next(keys), (TYPE_VOCAB, HIDDEN), jnp.float32),
        "emb_ln_g": ones(), "emb_ln_b": zeros(),
        "layers": [],
        "pool_w": nrm(next(keys), (HIDDEN, HIDDEN), jnp.float32), "pool_b": zeros(),
        "out_w": nrm(next(keys), (HIDDEN, 1), jnp.float32), "out_b": zeros(1),
    }
    for _ in range(NUM_LAYERS):
        params["layers"].append({
            # Q/K/V weights fused into one (HIDDEN, 3*HIDDEN) projection.
            "qkv_w": nrm(next(keys), (HIDDEN, 3 * HIDDEN)),
            "qkv_b": zeros(3 * HIDDEN),
            "ao_w": nrm(next(keys), (HIDDEN, HIDDEN)), "ao_b": zeros(),
            "ln1_g": ones(), "ln1_b": zeros(),
            "i_w": nrm(next(keys), (HIDDEN, INTERMEDIATE)), "i_b": zeros(INTERMEDIATE),
            "o_w": nrm(next(keys), (INTERMEDIATE, HIDDEN)), "o_b": zeros(),
            "ln2_g": ones(), "ln2_b": zeros(),
        })
    return params


def encoder_layer(x2d, layer, bias, batch, seq):
    d = HIDDEN
    # fused QKV projection: one pass over the activation slab, N = 3*HIDDEN
    qkv = linear(x2d, layer["qkv_w"], layer["qkv_b"])            # (M, 3D)
    q, k, v = qkv[:, :d], qkv[:, d:2 * d], qkv[:, 2 * d:]

    # head split in XLA glue; K is pre-transposed so the in-kernel QK^T is a
    # plain (S,hd)@(hd,S) matmul with no per-step XLU transpose.
    q4 = q.reshape(batch, seq, NUM_HEADS, HEAD_DIM).transpose(0, 2, 1, 3)
    kt = k.reshape(batch, seq, NUM_HEADS, HEAD_DIM).transpose(0, 2, 3, 1)
    v4 = v.reshape(batch, seq, NUM_HEADS, HEAD_DIM).transpose(0, 2, 1, 3)

    ctx = attention(q4, kt, v4, bias, 1.0 / math.sqrt(HEAD_DIM))  # (B, S, D)
    ctx2d = ctx.reshape(batch * seq, d)                           # heads pre-merged

    # TODO(synk): BERT-internal dropouts treated as identity (inference mode).
    # attention output proj + residual + LN1 fused in one kernel
    x1 = linear_residual_ln(ctx2d, layer["ao_w"], layer["ao_b"], x2d,
                            layer["ln1_g"], layer["ln1_b"])
    # GELU FFN + output proj + residual + LN2 fused in one kernel
    return ffn_residual_ln(x1, layer["i_w"], layer["i_b"],
                           layer["o_w"], layer["o_b"],
                           layer["ln2_g"], layer["ln2_b"])


def bert_base_uncase_forward(params, ids, mask, token_type_ids):
    b, s = ids.shape
    d = HIDDEN
    # Embedding lookups (data-dependent gather) stay in plain JAX.
    pos_ids = jnp.arange(s, dtype=jnp.int32)
    emb = (jnp.take(params["word_emb"], ids, axis=0)
           + jnp.take(params["pos_emb"], pos_ids, axis=0)[None, :, :]
           + jnp.take(params["type_emb"], token_type_ids, axis=0))
    x = layer_norm(emb.reshape(b * s, d), params["emb_ln_g"], params["emb_ln_b"])

    # HF-style extended attention mask: (1 - mask) * -10000, additive pre-softmax.
    neg = (1.0 - mask.astype(jnp.float32)) * -10000.0            # (B, S)
    bias = neg[:, None, :]                                       # (B, 1, S)

    for layer in params["layers"]:
        x = encoder_layer(x, layer, bias, b, s)

    seq_out = x.reshape(b, s, d)
    cls = seq_out[:, 0, :]                                       # (B, D)
    # pooler + final head are tiny (B, D)/(B, 1) ops with lane-sparse N -> plain
    # jnp instead of two pallas launches of pure overhead.
    pooled = jnp.tanh(jnp.dot(cls, params["pool_w"]) + params["pool_b"])
    # TODO(synk): nn.Dropout(0.3) is identity at inference time.
    logits = jnp.dot(pooled, params["out_w"]) + params["out_b"]  # (B, 1)
    return logits


if __name__ == "__main__":
    key = jax.random.PRNGKey(0)
    pkey, ikey = jax.random.split(key)
    params = init_params(pkey)

    B, S = 2, 8
    ids = jax.random.randint(ikey, (B, S), 0, VOCAB, dtype=jnp.int32)
    mask = jnp.array([[1] * S, [1] * (S - 2) + [0] * 2], dtype=jnp.int32)
    token_type_ids = jnp.concatenate(
        [jnp.zeros((B, S // 2), jnp.int32), jnp.ones((B, S - S // 2), jnp.int32)],
        axis=1)

    out = bert_base_uncase_forward(params, ids, mask, token_type_ids)
    out = jax.block_until_ready(out)
    assert out.shape == (B, 1) and out.dtype == jnp.float32
    print("KERNEL_OK")
</pallas_src>

<mosaic_0001>
module attributes {stable_mosaic.version = 11 : i64} {
  func.func @_layernorm_kernel(%arg0: i32, %arg1: memref<16x64xf32, #tpu.memory_space<vmem>>, %arg2: memref<1x64xf32, #tpu.memory_space<vmem>>, %arg3: memref<1x64xf32, #tpu.memory_space<vmem>>, %arg4: memref<16x64xf32, #tpu.memory_space<vmem>>) attributes {dimension_semantics = [#tpu.dimension_semantics<parallel>], iteration_bounds = array<i64: 1>, scalar_prefetch = 0 : i64, scratch_operands = 0 : i64, tpu.core_type = #tpu.core_type<tc>, window_params = [{transform_indices = @transform_0, window_bounds = array<i64: 16, 64>}, {pipeline_mode = #tpu.pipeline_mode<synchronous>, transform_indices = @transform_1, window_bounds = array<i64: 1, 64>}, {pipeline_mode = #tpu.pipeline_mode<synchronous>, transform_indices = @transform_2, window_bounds = array<i64: 1, 64>}, {transform_indices = @transform_3, window_bounds = array<i64: 16, 64>}]} {
    %c0 = arith.constant 0 : index
    %c0_0 = arith.constant 0 : index
    %0 = vector.load %arg1[%c0, %c0_0] : memref<16x64xf32, #tpu.memory_space<vmem>>, vector<16x64xf32>
    %c0_1 = arith.constant 0 : index
    %c0_2 = arith.constant 0 : index
    %1 = vector.load %arg2[%c0_1, %c0_2] : memref<1x64xf32, #tpu.memory_space<vmem>>, vector<1x64xf32>
    %c0_3 = arith.constant 0 : index
    %c0_4 = arith.constant 0 : index
    %2 = vector.load %arg3[%c0_3, %c0_4] : memref<1x64xf32, #tpu.memory_space<vmem>>, vector<1x64xf32>
    %cst = arith.constant dense<0.000000e+00> : vector<16xf32>
    %3 = vector.multi_reduction <add>, %0, %cst [1] : vector<16x64xf32> to vector<16xf32>
    %4 = vector.shape_cast %3 : vector<16xf32> to vector<16x1xf32>
    %cst_5 = arith.constant 6.400000e+01 : f32
    %5 = vector.broadcast %cst_5 : f32 to vector<16x1xf32>
    %6 = arith.divf %4, %5 : vector<16x1xf32>
    %7 = vector.broadcast %6 : vector<16x1xf32> to vector<16x64xf32>
    %8 = arith.subf %0, %7 : vector<16x64xf32>
    %9 = arith.mulf %8, %8 : vector<16x64xf32>
    %cst_6 = arith.constant dense<0.000000e+00> : vector<16xf32>
    %10 = vector.multi_reduction <add>, %9, %cst_6 [1] : vector<16x64xf32> to vector<16xf32>
    %11 = vector.shape_cast %10 : vector<16xf32> to vector<16x1xf32>
    %cst_7 = arith.constant 6.400000e+01 : f32
    %12 = vector.broadcast %cst_7 : f32 to vector<16x1xf32>
    %13 = arith.divf %11, %12 : vector<16x1xf32>
    %cst_8 = arith.constant 9.99999996E-13 : f32
    %14 = vector.broadcast %cst_8 : f32 to vector<16x1xf32>
    %15 = arith.addf %13, %14 : vector<16x1xf32>
    %16 = math.rsqrt %15 : vector<16x1xf32>
    %17 = vector.broadcast %16 : vector<16x1xf32> to vector<16x64xf32>
    %18 = arith.mulf %8, %17 : vector<16x64xf32>
    %19 = vector.broadcast %1 : vector<1x64xf32> to vector<16x64xf32>
    %20 = arith.mulf %18, %19 : vector<16x64xf32>
    %21 = vector.broadcast %2 : vector<1x64xf32> to vector<16x64xf32>
    %22 = arith.addf %20, %21 : vector<16x64xf32>
    %c0_9 = arith.constant 0 : index
    %c0_10 = arith.constant 0 : index
    %23 = vector.load %arg4[%c0_9, %c0_10] : memref<16x64xf32, #tpu.memory_space<vmem>>, vector<16x64xf32>
    tpu.vector_store %arg4[%c0_9, %c0_10], %22 {strides = array<i32>} : memref<16x64xf32, #tpu.memory_space<vmem>>, vector<16x64xf32>,
    return
  }
  func.func @transform_0(%arg0: i32) -> (i32, i32) {
    %c0_i32 = arith.constant 0 : i32
    %c0_i32_0 = arith.constant 0 : i32
    return %arg0, %c0_i32 : i32, i32
  }
  func.func @transform_1(%arg0: i32) -> (i32, i32) {
    %c0_i32 = arith.constant 0 : i32
    %c0_i32_0 = arith.constant 0 : i32
    %c0_i32_1 = arith.constant 0 : i32
    return %c0_i32, %c0_i32_0 : i32, i32
  }
  func.func @transform_2(%arg0: i32) -> (i32, i32) {
    %c0_i32 = arith.constant 0 : i32
    %c0_i32_0 = arith.constant 0 : i32
    %c0_i32_1 = arith.constant 0 : i32
    return %c0_i32, %c0_i32_0 : i32, i32
  }
  func.func @transform_3(%arg0: i32) -> (i32, i32) {
    %c0_i32 = arith.constant 0 : i32
    %c0_i32_0 = arith.constant 0 : i32
    return %arg0, %c0_i32 : i32, i32
  }
}

</mosaic_0001>

<llo_original>
// kernel: tpu_custom_call.1
$region0: #{tpu_custom_call.1}
  #allocation0 [shape = 'u32[]', space=smem, size = 0x4, offset = 0x4, fixed_abs, tag = 'smem constant byte address 0x4 - core index']
  #allocation1 [shape = 'u32[144,128]{1,0:T(1,128)}', space=vmem, size = 0x12000, scoped, tag = 'internal scratch']
  %s0 = inlined_call_operand.hbm [shape: f32[16,64], index: 0, kind: input, shape index: {}]
  %s1 = inlined_call_operand.vmem [shape: f32[1,64], index: 1, kind: input, shape index: {}]
  %s2 = inlined_call_operand.vmem [shape: f32[1,64], index: 2, kind: input, shape index: {}]
  %s3 = inlined_call_operand.hbm [shape: f32[16,64], index: 3, kind: output, shape index: {}]
  %s4 = sld [smem:[#allocation0]]
  $region26: #{tpu_custom_call.1} parent=0
    _
  %s6 = ssub.s32 1, %s4
  %s7 = scalar_select 0, %s6, %s4
  $region1: #{tpu_custom_call.1} parent=0
    #allocation2 [shape = 'u8[8192]{0}', space=vmem, size = 0x2000, scoped, tag = 'input window, operand 0, single buffered']
    #allocation3 [shape = 's32[1]{0}', space=sflag, size = 0x4, scoped, tag = 'scoped memory for tpu_custom_call.1']
    #allocation4 [shape = 's32[1]{0}', space=sflag, size = 0x4, scoped, tag = 'scoped memory for tpu_custom_call.1']
    #allocation5 [shape = 'u8[8192]{0}', space=vmem, size = 0x2000, scoped, tag = 'output window, operand 0, single buffered']
    %8 = vsyncpa [#allocation3], 0
    %9 = vsyncpa [#allocation4], 0
    // Predicated region
    $region2: #{tpu_custom_call.1} parent=1 // pred_check
      _
    $region3: #{tpu_custom_call.1} parent=1 // pred_check_branch
      %11 = sbr.rel (0) target = $region5
    $region4: #{tpu_custom_call.1} parent=1 // pred_region
      %s13 = ssub.s32 256, 256
      %14 = vsyncadd [#allocation3], %s13
      %s15 = sshll.u32 [#allocation2], 4
      %s16 = int_to_ptr.vmem [resolvable:$true] %s15
      %21 = dma.hbm_to_vmem [thread:$0]  %s0, 256, %s16, [#allocation3], 128, 128, 8
    $region5: #{tpu_custom_call.1} parent=1 // pred_fallthru
      _
    // Predicated region
    $region6: #{tpu_custom_call.1} parent=1 // pred_check
      _
    $region7: #{tpu_custom_call.1} parent=1 // pred_check_branch
      %23 = sbr.rel (0) target = $region9
    $region8: #{tpu_custom_call.1} parent=1 // pred_region
      _
    $region9: #{tpu_custom_call.1} parent=1 // pred_fallthru
      _
    // Predicated region
    $region10: #{tpu_custom_call.1} parent=1 // pred_check
      _
    $region11: #{tpu_custom_call.1} parent=1 // pred_check_branch
      %25 = sbr.rel (0) target = $region13
    $region12: #{tpu_custom_call.1} parent=1 // pred_region
      _
    $region13: #{tpu_custom_call.1} parent=1 // pred_fallthru
      _
    // Predicated region
    $region14: #{tpu_custom_call.1} parent=1 // pred_check
      _
    $region15: #{tpu_custom_call.1} parent=1 // pred_check_branch
      %27 = sbr.rel (0) target = $region17
    $region16: #{tpu_custom_call.1} parent=1 // pred_region
      %28 = dma.done [#allocation3], 256
    $region17: #{tpu_custom_call.1} parent=1 // pred_fallthru
      _
    %v29 = vld [vmem:[#allocation2] sm:$0xff]
    %v30 = vld [vmem:[#allocation2 + $0x8] sm:$0xff]
    %v31 = vld [vmem:[%s1] sm:$0x1]
    %v32 = vld [vmem:[%s2] sm:$0x1]
    %vm33 = vcmask 523264
    %v34 = vsel %vm33, %v29, 0.0
    %35 = vadd.xlane.f32.xlu0 %v34
    %v36 = vpop.xlane.xlu0 %35
    %v37 = vsel %vm33, %v30, 0.0
    %38 = vadd.xlane.f32.xlu0 %v37
    %v39 = vpop.xlane.xlu0 %38
    %v40 = vrcp.pop 64.0
    %v41 = vmul.f32 %v36, %v40
    %v42 = vmul.f32 %v39, %v40
    %v43 = vsub.f32 %v29, %v41
    %v44 = vsub.f32 %v30, %v42
    %v45 = vmul.f32 %v43, %v43
    %v46 = vmul.f32 %v44, %v44
    %v47 = vsel %vm33, %v45, 0.0
    %48 = vadd.xlane.f32.xlu0 %v47
    %v49 = vpop.xlane.xlu0 %48
    %v50 = vsel %vm33, %v46, 0.0
    %51 = vadd.xlane.f32.xlu0 %v50
    %v52 = vpop.xlane.xlu0 %51
    %v53 = vmul.f32 %v49, %v40
    %v54 = vmul.f32 %v52, %v40
    %v55 = vadd.f32 %v53, 1e-12
    %v56 = vadd.f32 %v54, 1e-12
    %v57 = vrsqrt.pop %v55
    %v58 = vrsqrt.pop %v56
    %v59 = vmul.f32 %v43, %v57
    %v60 = vmul.f32 %v44, %v58
    %v62 = vlaneseq
    %v63 = vshrl.u32 %v62, 7
    %v64 = vsub.s32 0, %v63
    %v65 = vrot.slane %v31, %v64
    %v67 = vmul.f32 %v59, %v65
    %v68 = vmul.f32 %v60, %v65
    %v70 = vlaneseq
    %v71 = vshrl.u32 %v70, 7
    %v72 = vsub.s32 0, %v71
    %v73 = vrot.slane %v32, %v72
    %v75 = vadd.f32 %v67, %v73
    %v76 = vadd.f32 %v68, %v73
    %77 = vst.msk [vmem:[#allocation5] sm:$0xff] %vm33, %v75
    %78 = vst.msk [vmem:[#allocation5 + $0x8] sm:$0xff] %vm33, %v76
    // Predicated region
    $region18: #{tpu_custom_call.1} parent=1 // pred_check
      _
    $region19: #{tpu_custom_call.1} parent=1 // pred_check_branch
      %80 = sbr.rel (0) target = $region21
    $region20: #{tpu_custom_call.1} parent=1 // pred_region
      %s82 = ssub.s32 256, 256
      %83 = vsyncadd [#allocation4], %s82
      %s84 = sshll.u32 [#allocation5], 4
      %s85 = int_to_ptr.vmem [resolvable:$true] %s84
      %90 = dma.vmem_to_hbm [thread:$0]  %s85, 256, %s3, [#allocation4], 128, 128, 8
    $region21: #{tpu_custom_call.1} parent=1 // pred_fallthru
      _
    // Predicated region
    $region22: #{tpu_custom_call.1} parent=1 // pred_check
      _
    $region23: #{tpu_custom_call.1} parent=1 // pred_check_branch
      %92 = sbr.rel (0) target = $region25
    $region24: #{tpu_custom_call.1} parent=1 // pred_region
      %93 = dma.done [#allocation4], 256
    $region25: #{tpu_custom_call.1} parent=1 // pred_fallthru
      _
    %94 = vsyncpa [#allocation3], 1
    %95 = vsyncpa [#allocation4], 1

</llo_original>
